<compile_context>
chip_gen: v5e
topology: v5e:2x2
jax: 0.10.0
libtpu: 0.0.40
codegen_flags: <defaults>
</compile_context>

<pallas_src>
import jax
import jax.numpy as jnp
from jax.experimental import pallas as pl
from jax.experimental.pallas import tpu as pltpu


def _round_up(x, m):
    return ((x + m - 1) // m) * m


def _cdiv(a, b):
    return (a + b - 1) // b


def _vmem_limit_bytes():
    """Generation-aware scoped-VMEM limit. Fallback = 64 MiB (v7x per-TC)."""
    cap = 64 << 20
    try:
        cap = int(pltpu.get_tpu_info().vmem_capacity_bytes)
    except Exception:
        pass
    # Leave ~8 MiB headroom; never ask for more than 100 MiB (v5e/v6e: 128 MiB).
    return int(min(max(cap - (8 << 20), 32 << 20), 100 << 20))


# --------------------------------------------------------------------------
# Kernels
# --------------------------------------------------------------------------
def _mlp_resident_kernel(x_ref, w1_ref, b1_ref, w2_ref, b2_ref, o_ref):
    """Weights are VMEM-resident: one fused fc1->relu->fc2->relu per batch tile."""
    h = jnp.dot(x_ref[...], w1_ref[...], preferred_element_type=jnp.float32)
    h = jnp.maximum(h + b1_ref[...], 0.0)
    y = jnp.dot(h.astype(w2_ref.dtype), w2_ref[...],
                preferred_element_type=jnp.float32)
    o_ref[...] = jnp.maximum(y + b2_ref[...], 0.0).astype(o_ref.dtype)


def _make_stream_kernel(acc_in_out):
    """4H-streaming kernel. acc_in_out=True -> accumulate directly into the
    resident f32 output block; otherwise use an f32 VMEM scratch."""

    def kernel(x_ref, w1_ref, b1_ref, w2_ref, b2_ref, o_ref, *scratch):
        k = pl.program_id(1)
        acc = o_ref if acc_in_out else scratch[0]

        @pl.when(k == 0)
        def _init():
            acc[...] = jnp.zeros(acc.shape, acc.dtype)

        # fc1 chunk: (tb, Hp) @ (Hp, tk) -> (tb, tk), f32 MXU accumulation.
        h = jnp.dot(x_ref[...], w1_ref[...], preferred_element_type=jnp.float32)
        # b1 is fully VMEM-resident, shaped (n_k, tk); take the k-th row.
        h = jnp.maximum(h + b1_ref[pl.ds(k, 1), :], 0.0)
        # fc2 partial: (tb, tk) @ (tk, Hp), accumulated in f32.
        acc[...] += jnp.dot(h.astype(w2_ref.dtype), w2_ref[...],
                            preferred_element_type=jnp.float32)

        # Epilogue on the last reduction step: bias + ReLU (+ cast/store).
        @pl.when(k == pl.num_programs(1) - 1)
        def _finalize():
            y = jnp.maximum(acc[...] + b2_ref[...], 0.0)
            o_ref[...] = y.astype(o_ref.dtype)

    return kernel


# --------------------------------------------------------------------------
# Wrapper
# --------------------------------------------------------------------------
def prepare_mlp_params(w1, b1, w2, b2, *, compute_dtype=jnp.bfloat16):
    """Pad & cast MLPBlock weights ONCE (hoisted out of the per-call path).

    w1: (H, 4H)  (transposed PyTorch fc1.weight), b1: (4H,) or (1, 4H)
    w2: (4H, H)  (transposed PyTorch fc2.weight), b2: (H,)  or (1, H)
    """
    H, H4 = w1.shape
    assert w2.shape == (H4, H)
    f32 = jnp.float32
    # Lane-dense padding. Round larger dims to 256 so the 2x256x256 MXU on
    # v6e/v7x is fully fed; 128 is enough for tiny dims (and for v5e).
    Hp = _round_up(H, 256 if H > 128 else 128)
    H4p = _round_up(H4, 256 if H4 > 128 else 128)
    w1p = jnp.zeros((Hp, H4p), compute_dtype).at[:H, :H4].set(
        w1.astype(compute_dtype))
    b1p = jnp.zeros((1, H4p), f32).at[:, :H4].set(b1.astype(f32).reshape(1, H4))
    w2p = jnp.zeros((H4p, Hp), compute_dtype).at[:H4, :H].set(
        w2.astype(compute_dtype))
    b2p = jnp.zeros((1, Hp), f32).at[:, :H].set(b2.astype(f32).reshape(1, H))
    return {"w1": w1p, "b1": b1p, "w2": w2p, "b2": b2p, "H": H, "H4": H4}


def mlp_block(x, params, *, tile_b=512, tile_k=256, out_dtype=None,
              force_streaming=False):
    """Fused MLPBlock forward: relu(relu(x @ w1 + b1) @ w2 + b2).

    x: (B, H) float32; params: output of prepare_mlp_params().
    Returns (B, H) in out_dtype (default: x.dtype).
    """
    w1p, b1p, w2p, b2p = params["w1"], params["b1"], params["w2"], params["b2"]
    B, H = x.shape
    assert H == params["H"]
    Hp, H4p = w1p.shape
    compute_dtype = w1p.dtype
    cbytes = jnp.dtype(compute_dtype).itemsize
    out_dtype = x.dtype if out_dtype is None else out_dtype
    obytes = jnp.dtype(out_dtype).itemsize
    f32 = jnp.float32

    vmem_limit = _vmem_limit_bytes()
    weight_bytes = 2 * Hp * H4p * cbytes
    bias_bytes = 4 * (H4p + Hp)

    resident = (not force_streaming) and (
        weight_bytes + bias_bytes <= vmem_limit // 2)

    # ---- pick batch tile from the actual VMEM budget ----------------------
    if resident:
        # per batch-row: double-buffered x + out tiles + materialized h (f32+bf16)
        per_row = 2 * Hp * cbytes + 2 * Hp * obytes + H4p * (4 + cbytes)
        headroom = vmem_limit - weight_bytes - bias_bytes - (2 << 20)
        tb_cap = max(16, (headroom // per_row) // 16 * 16)
    else:
        tk = min(tile_k, H4p)
        while H4p % tk:                  # H4p is a multiple of 128, so this ends
            tk -= 128
        fixed = 4 * Hp * tk * cbytes + bias_bytes + (2 << 20)  # dbuf w1/w2 chunks
        per_row = 2 * Hp * cbytes + 2 * Hp * obytes + tk * (4 + cbytes)
        if out_dtype != jnp.float32:
            per_row += Hp * 4            # f32 accumulator scratch
        tb_cap = max(16, ((vmem_limit - fixed) // per_row) // 16 * 16)

    tb = max(16, min(tile_b, _round_up(B, 16), tb_cap))
    Bp = _round_up(B, tb)
    # Ensure >= 2 batch tiles when the batch allows it so the "parallel" axis
    # actually shards across both TensorCores on v7x megacore.
    if Bp // tb < 2 and B > 16:
        tb = min(tb, _round_up(_cdiv(B, 2), 16))
        Bp = _round_up(B, tb)
    n_btiles = Bp // tb

    # Only x is padded/cast per call (weights were prepared once).
    xp = jnp.zeros((Bp, Hp), compute_dtype).at[:B, :H].set(
        x.astype(compute_dtype))

    if resident:
        cost = pl.CostEstimate(
            flops=4 * Bp * Hp * H4p,
            transcendentals=0,
            bytes_accessed=int(Bp * Hp * cbytes + weight_bytes + bias_bytes
                               + Bp * Hp * obytes))
        out = pl.pallas_call(
            _mlp_resident_kernel,
            out_shape=jax.ShapeDtypeStruct((Bp, Hp), out_dtype),
            grid_spec=pltpu.PrefetchScalarGridSpec(
                num_scalar_prefetch=0,
                grid=(n_btiles,),
                in_specs=[
                    pl.BlockSpec((tb, Hp), lambda i: (i, 0)),     # x tile
                    pl.BlockSpec((Hp, H4p), lambda i: (0, 0)),    # w1 resident
                    pl.BlockSpec((1, H4p), lambda i: (0, 0)),     # b1 resident
                    pl.BlockSpec((H4p, Hp), lambda i: (0, 0)),    # w2 resident
                    pl.BlockSpec((1, Hp), lambda i: (0, 0)),      # b2 resident
                ],
                out_specs=pl.BlockSpec((tb, Hp), lambda i: (i, 0)),
            ),
            compiler_params=pltpu.CompilerParams(
                dimension_semantics=("parallel",),
                vmem_limit_bytes=vmem_limit),
            cost_estimate=cost,
        )(xp, w1p, b1p, w2p, b2p)
    else:
        n_k = H4p // tk
        b1r = b1p.reshape(n_k, tk)       # row k == bias chunk k, fully resident
        acc_in_out = (out_dtype == jnp.float32)
        scratch = [] if acc_in_out else [pltpu.VMEM((tb, Hp), f32)]
        cost = pl.CostEstimate(
            flops=4 * Bp * Hp * H4p,
            transcendentals=0,
            bytes_accessed=int(Bp * Hp * cbytes
                               + n_btiles * weight_bytes   # re-streamed per tile
                               + bias_bytes + Bp * Hp * obytes))
        out = pl.pallas_call(
            _make_stream_kernel(acc_in_out),
            out_shape=jax.ShapeDtypeStruct((Bp, Hp), out_dtype),
            grid_spec=pltpu.PrefetchScalarGridSpec(
                num_scalar_prefetch=0,
                grid=(n_btiles, n_k),
                in_specs=[
                    pl.BlockSpec((tb, Hp), lambda i, k: (i, 0)),    # x tile
                    pl.BlockSpec((Hp, tk), lambda i, k: (0, k)),    # w1 chunk
                    pl.BlockSpec((n_k, tk), lambda i, k: (0, 0)),   # b1 resident
                    pl.BlockSpec((tk, Hp), lambda i, k: (k, 0)),    # w2 chunk
                    pl.BlockSpec((1, Hp), lambda i, k: (0, 0)),     # b2 resident
                ],
                out_specs=pl.BlockSpec((tb, Hp), lambda i, k: (i, 0)),
                scratch_shapes=scratch,
            ),
            compiler_params=pltpu.CompilerParams(
                dimension_semantics=("parallel", "arbitrary"),
                vmem_limit_bytes=vmem_limit),
            cost_estimate=cost,
        )(xp, w1p, b1r, w2p, b2p)

    return out[:B, :H]


# --------------------------------------------------------------------------
# Reference / init helpers
# --------------------------------------------------------------------------
def init_mlp_params(key, hidden_dim, dtype=jnp.float32):
    """nn.Linear-style init (uniform +/- 1/sqrt(fan_in)); weights as (in, out)."""
    h, h4 = hidden_dim, hidden_dim * 4
    k1, k2, k3, k4 = jax.random.split(key, 4)
    bound1 = 1.0 / jnp.sqrt(h)
    bound2 = 1.0 / jnp.sqrt(h4)
    w1 = jax.random.uniform(k1, (h, h4), dtype, -bound1, bound1)
    b1 = jax.random.uniform(k2, (1, h4), dtype, -bound1, bound1)
    w2 = jax.random.uniform(k3, (h4, h), dtype, -bound2, bound2)
    b2 = jax.random.uniform(k4, (1, h), dtype, -bound2, bound2)
    return w1, b1, w2, b2


def mlp_block_ref(x, w1, b1, w2, b2, compute_dtype=jnp.bfloat16):
    """Pure-JAX reference mirroring the kernel's bf16-MXU / f32-accum math."""
    f32 = jnp.float32
    h = jnp.dot(x.astype(compute_dtype), w1.astype(compute_dtype),
                preferred_element_type=f32)
    h = jnp.maximum(h + b1.astype(f32).reshape(1, -1), 0.0)
    y = jnp.dot(h.astype(compute_dtype), w2.astype(compute_dtype),
                preferred_element_type=f32)
    y = jnp.maximum(y + b2.astype(f32).reshape(1, -1), 0.0)
    return y.astype(x.dtype)


if __name__ == "__main__":
    key = jax.random.PRNGKey(0)
    kx, kp, kx2, kp2 = jax.random.split(key, 4)

    # --- 1. MLPBlock(hidden_dim=32), batch=8: resident-weight fast path ----
    hidden_dim, batch = 32, 8
    x = jax.random.normal(kx, (batch, hidden_dim), jnp.float32)
    w1, b1, w2, b2 = init_mlp_params(kp, hidden_dim)
    params = prepare_mlp_params(w1, b1, w2, b2)       # pad/cast weights ONCE
    out = mlp_block(x, params)
    jax.block_until_ready(out)
    ref = mlp_block_ref(x, w1, b1, w2, b2)
    assert out.shape == (batch, hidden_dim)
    assert jnp.allclose(out, ref, atol=1e-3, rtol=1e-3), (
        float(jnp.max(jnp.abs(out - ref))))

    # --- 2. also exercise the 4H-streaming reduction path ------------------
    hidden_dim2, batch2 = 128, 64
    x2 = jax.random.normal(kx2, (batch2, hidden_dim2), jnp.float32)
    w1b, b1b, w2b, b2b = init_mlp_params(kp2, hidden_dim2)
    params2 = prepare_mlp_params(w1b, b1b, w2b, b2b)
    out2 = mlp_block(x2, params2, force_streaming=True, tile_k=256)
    jax.block_until_ready(out2)
    ref2 = mlp_block_ref(x2, w1b, b1b, w2b, b2b)
    assert out2.shape == (batch2, hidden_dim2)
    assert jnp.allclose(out2, ref2, atol=1e-3, rtol=1e-3), (
        float(jnp.max(jnp.abs(out2 - ref2))))

    print("KERNEL_OK")
</pallas_src>

<mosaic_0001>
module attributes {stable_mosaic.version = 11 : i64} {
  func.func @_mlp_resident_kernel(%arg0: i32, %arg1: memref<16x128xbf16, #tpu.memory_space<vmem>>, %arg2: memref<128x128xbf16, #tpu.memory_space<vmem>>, %arg3: memref<1x128xf32, #tpu.memory_space<vmem>>, %arg4: memref<128x128xbf16, #tpu.memory_space<vmem>>, %arg5: memref<1x128xf32, #tpu.memory_space<vmem>>, %arg6: memref<16x128xf32, #tpu.memory_space<vmem>>) attributes {dimension_semantics = [#tpu.dimension_semantics<parallel>], iteration_bounds = array<i64: 1>, scalar_prefetch = 0 : i64, scratch_operands = 0 : i64, tpu.core_type = #tpu.core_type<tc>, window_params = [{transform_indices = @transform_0, window_bounds = array<i64: 16, 128>}, {pipeline_mode = #tpu.pipeline_mode<synchronous>, transform_indices = @transform_1, window_bounds = array<i64: 128, 128>}, {pipeline_mode = #tpu.pipeline_mode<synchronous>, transform_indices = @transform_2, window_bounds = array<i64: 1, 128>}, {pipeline_mode = #tpu.pipeline_mode<synchronous>, transform_indices = @transform_3, window_bounds = array<i64: 128, 128>}, {pipeline_mode = #tpu.pipeline_mode<synchronous>, transform_indices = @transform_4, window_bounds = array<i64: 1, 128>}, {transform_indices = @transform_5, window_bounds = array<i64: 16, 128>}]} {
    %c0 = arith.constant 0 : index
    %c0_0 = arith.constant 0 : index
    %0 = vector.load %arg1[%c0, %c0_0] : memref<16x128xbf16, #tpu.memory_space<vmem>>, vector<16x128xbf16>
    %c0_1 = arith.constant 0 : index
    %c0_2 = arith.constant 0 : index
    %1 = vector.load %arg2[%c0_1, %c0_2] : memref<128x128xbf16, #tpu.memory_space<vmem>>, vector<128x128xbf16>
    %cst = arith.constant dense<0.000000e+00> : vector<16x128xf32>
    %2 = tpu.matmul %0, %1, %cst {dimension_numbers = #tpu.dot_dimension_numbers<[1], [0], [0], [1], [0, 0, 1, 1], [], []>} : vector<16x128xbf16>, vector<128x128xbf16>, vector<16x128xf32> -> vector<16x128xf32>
    %c0_3 = arith.constant 0 : index
    %c0_4 = arith.constant 0 : index
    %3 = vector.load %arg3[%c0_3, %c0_4] : memref<1x128xf32, #tpu.memory_space<vmem>>, vector<1x128xf32>
    %4 = vector.broadcast %3 : vector<1x128xf32> to vector<16x128xf32>
    %5 = arith.addf %2, %4 : vector<16x128xf32>
    %cst_5 = arith.constant 0.000000e+00 : f32
    %6 = vector.broadcast %cst_5 : f32 to vector<16x128xf32>
    %7 = arith.maximumf %5, %6 : vector<16x128xf32>
    %8 = arith.truncf %7 : vector<16x128xf32> to vector<16x128xbf16>
    %c0_6 = arith.constant 0 : index
    %c0_7 = arith.constant 0 : index
    %9 = vector.load %arg4[%c0_6, %c0_7] : memref<128x128xbf16, #tpu.memory_space<vmem>>, vector<128x128xbf16>
    %cst_8 = arith.constant dense<0.000000e+00> : vector<16x128xf32>
    %10 = tpu.matmul %8, %9, %cst_8 {dimension_numbers = #tpu.dot_dimension_numbers<[1], [0], [0], [1], [0, 0, 1, 1], [], []>} : vector<16x128xbf16>, vector<128x128xbf16>, vector<16x128xf32> -> vector<16x128xf32>
    %c0_9 = arith.constant 0 : index
    %c0_10 = arith.constant 0 : index
    %11 = vector.load %arg5[%c0_9, %c0_10] : memref<1x128xf32, #tpu.memory_space<vmem>>, vector<1x128xf32>
    %12 = vector.broadcast %11 : vector<1x128xf32> to vector<16x128xf32>
    %13 = arith.addf %10, %12 : vector<16x128xf32>
    %cst_11 = arith.constant 0.000000e+00 : f32
    %14 = vector.broadcast %cst_11 : f32 to vector<16x128xf32>
    %15 = arith.maximumf %13, %14 : vector<16x128xf32>
    %c0_12 = arith.constant 0 : index
    %c0_13 = arith.constant 0 : index
    %16 = vector.load %arg6[%c0_12, %c0_13] : memref<16x128xf32, #tpu.memory_space<vmem>>, vector<16x128xf32>
    tpu.vector_store %arg6[%c0_12, %c0_13], %15 {strides = array<i32>} : memref<16x128xf32, #tpu.memory_space<vmem>>, vector<16x128xf32>,
    return
  }
  func.func @transform_0(%arg0: i32) -> (i32, i32) {
    %c0_i32 = arith.constant 0 : i32
    %c0_i32_0 = arith.constant 0 : i32
    return %arg0, %c0_i32 : i32, i32
  }
  func.func @transform_1(%arg0: i32) -> (i32, i32) {
    %c0_i32 = arith.constant 0 : i32
    %c0_i32_0 = arith.constant 0 : i32
    %c0_i32_1 = arith.constant 0 : i32
    return %c0_i32, %c0_i32_0 : i32, i32
  }
  func.func @transform_2(%arg0: i32) -> (i32, i32) {
    %c0_i32 = arith.constant 0 : i32
    %c0_i32_0 = arith.constant 0 : i32
    %c0_i32_1 = arith.constant 0 : i32
    return %c0_i32, %c0_i32_0 : i32, i32
  }
  func.func @transform_3(%arg0: i32) -> (i32, i32) {
    %c0_i32 = arith.constant 0 : i32
    %c0_i32_0 = arith.constant 0 : i32
    %c0_i32_1 = arith.constant 0 : i32
    return %c0_i32, %c0_i32_0 : i32, i32
  }
  func.func @transform_4(%arg0: i32) -> (i32, i32) {
    %c0_i32 = arith.constant 0 : i32
    %c0_i32_0 = arith.constant 0 : i32
    %c0_i32_1 = arith.constant 0 : i32
    return %c0_i32, %c0_i32_0 : i32, i32
  }
  func.func @transform_5(%arg0: i32) -> (i32, i32) {
    %c0_i32 = arith.constant 0 : i32
    %c0_i32_0 = arith.constant 0 : i32
    return %arg0, %c0_i32 : i32, i32
  }
}

</mosaic_0001>

<llo_original>
// kernel: tpu_custom_call.1
$region0: #{tpu_custom_call.1}
  #allocation0 [shape = 'u32[]', space=smem, size = 0x4, offset = 0x4, fixed_abs, tag = 'smem constant byte address 0x4 - core index']
  #allocation1 [shape = 'u32[72,128]{1,0:T(1,128)}', space=vmem, size = 0x9000, scoped, tag = 'internal scratch']
  %s0 = inlined_call_operand.hbm [shape: bf16[16,128], index: 0, kind: input, shape index: {}]
  %s1 = inlined_call_operand.hbm [shape: bf16[128,128], index: 1, kind: input, shape index: {}]
  %s2 = inlined_call_operand.vmem [shape: f32[1,128], index: 2, kind: input, shape index: {}]
  %s3 = inlined_call_operand.hbm [shape: bf16[128,128], index: 3, kind: input, shape index: {}]
  %s4 = inlined_call_operand.vmem [shape: f32[1,128], index: 4, kind: input, shape index: {}]
  %s5 = inlined_call_operand.hbm [shape: f32[16,128], index: 5, kind: output, shape index: {}]
  %s6 = sld [smem:[#allocation0]]
  $region42: #{tpu_custom_call.1} parent=0
    _
  %s8 = ssub.s32 1, %s6
  %s9 = scalar_select 0, %s8, %s6
  $region1: #{tpu_custom_call.1} parent=0
    #allocation2 [shape = 'u8[4096]{0}', space=vmem, size = 0x1000, scoped, tag = 'input window, operand 0, single buffered']
    #allocation3 [shape = 's32[1]{0}', space=sflag, size = 0x4, scoped, tag = 'scoped memory for tpu_custom_call.1']
    #allocation4 [shape = 's32[1]{0}', space=sflag, size = 0x4, scoped, tag = 'scoped memory for tpu_custom_call.1']
    #allocation5 [shape = 'u8[32768]{0}', space=vmem, size = 0x8000, scoped, tag = 'input window, operand 1, single buffered']
    #allocation6 [shape = 's32[1]{0}', space=sflag, size = 0x4, scoped, tag = 'scoped memory for tpu_custom_call.1']
    #allocation7 [shape = 'u8[32768]{0}', space=vmem, size = 0x8000, scoped, tag = 'input window, operand 3, single buffered']
    #allocation8 [shape = 'u8[8192]{0}', space=vmem, size = 0x2000, scoped, tag = 'output window, operand 0, single buffered']
    %10 = vsyncpa [#allocation3], 0
    %11 = vsyncpa [#allocation6], 0
    %12 = vsyncpa [#allocation4], 0
    // Predicated region
    $region2: #{tpu_custom_call.1} parent=1 // pred_check
      _
    $region3: #{tpu_custom_call.1} parent=1 // pred_check_branch
      %14 = sbr.rel (0) target = $region5
    $region4: #{tpu_custom_call.1} parent=1 // pred_region
      %16 = vsyncadd [#allocation3], 0
      %s17 = sshll.u32 %s0, 4
      %s18 = int_to_ptr.hbm [resolvable:$true] %s17
      %s19 = sshll.u32 [#allocation2], 4
      %s20 = int_to_ptr.vmem [resolvable:$true] %s19
      %25 = dma.hbm_to_vmem [thread:$0]  %s18, 128, %s20, [#allocation3], 64, 64, 4
    $region5: #{tpu_custom_call.1} parent=1 // pred_fallthru
      _
    // Predicated region
    $region6: #{tpu_custom_call.1} parent=1 // pred_check
      _
    $region7: #{tpu_custom_call.1} parent=1 // pred_check_branch
      %27 = sbr.rel (0) target = $region9
    $region8: #{tpu_custom_call.1} parent=1 // pred_region
      %29 = vsyncadd [#allocation6], 0
      %s30 = sshll.u32 %s1, 4
      %s31 = int_to_ptr.hbm [resolvable:$true] %s30
      %s32 = sshll.u32 [#allocation5], 4
      %s33 = int_to_ptr.vmem [resolvable:$true] %s32
      %38 = dma.hbm_to_vmem [thread:$0]  %s31, 1024, %s33, [#allocation6], 64, 64, 4
    $region9: #{tpu_custom_call.1} parent=1 // pred_fallthru
      _
    // Predicated region
    $region10: #{tpu_custom_call.1} parent=1 // pred_check
      _
    $region11: #{tpu_custom_call.1} parent=1 // pred_check_branch
      %40 = sbr.rel (0) target = $region13
    $region12: #{tpu_custom_call.1} parent=1 // pred_region
      _
    $region13: #{tpu_custom_call.1} parent=1 // pred_fallthru
      _
    // Predicated region
    $region14: #{tpu_custom_call.1} parent=1 // pred_check
      _
    $region15: #{tpu_custom_call.1} parent=1 // pred_check_branch
      %42 = sbr.rel (0) target = $region17
    $region16: #{tpu_custom_call.1} parent=1 // pred_region
      %44 = vsyncadd [#allocation6], 0
      %s45 = sshll.u32 %s3, 4
      %s46 = int_to_ptr.hbm [resolvable:$true] %s45
      %s47 = sshll.u32 [#allocation7], 4
      %s48 = int_to_ptr.vmem [resolvable:$true] %s47
      %53 = dma.hbm_to_vmem [thread:$0]  %s46, 1024, %s48, [#allocation6], 64, 64, 4
    $region17: #{tpu_custom_call.1} parent=1 // pred_fallthru
      _
    // Predicated region
    $region18: #{tpu_custom_call.1} parent=1 // pred_check
      _
    $region19: #{tpu_custom_call.1} parent=1 // pred_check_branch
      %55 = sbr.rel (0) target = $region21
    $region20: #{tpu_custom_call.1} parent=1 // pred_region
      _
    $region21: #{tpu_custom_call.1} parent=1 // pred_fallthru
      _
    // Predicated region
    $region22: #{tpu_custom_call.1} parent=1 // pred_check
      _
    $region23: #{tpu_custom_call.1} parent=1 // pred_check_branch
      %57 = sbr.rel (0) target = $region25
    $region24: #{tpu_custom_call.1} parent=1 // pred_region
      %59 = dma.done [#allocation3], 128
    $region25: #{tpu_custom_call.1} parent=1 // pred_fallthru
      _
    // Predicated region
    $region26: #{tpu_custom_call.1} parent=1 // pred_check
      _
    $region27: #{tpu_custom_call.1} parent=1 // pred_check_branch
      %61 = sbr.rel (0) target = $region29
    $region28: #{tpu_custom_call.1} parent=1 // pred_region
      %63 = dma.done [#allocation6], 1024
    $region29: #{tpu_custom_call.1} parent=1 // pred_fallthru
      _
    // Predicated region
    $region30: #{tpu_custom_call.1} parent=1 // pred_check
      _
    $region31: #{tpu_custom_call.1} parent=1 // pred_check_branch
      %65 = sbr.rel (0) target = $region33
    $region32: #{tpu_custom_call.1} parent=1 // pred_region
      %67 = dma.done [#allocation6], 1024
    $region33: #{tpu_custom_call.1} parent=1 // pred_fallthru
      _
    %v68 = vld [vmem:[#allocation2] sm:$0xf]
    %v69 = vld [vmem:[#allocation2 + $0x4] sm:$0xf]
    %v70 = vld [vmem:[#allocation5] sm:$0xf]
    %v71 = vld [vmem:[#allocation5 + $0x4] sm:$0xf]
    %v72 = vld [vmem:[#allocation5 + $0x8] sm:$0xf]
    %v73 = vld [vmem:[#allocation5 + $0xc] sm:$0xf]
    %v74 = vld [vmem:[#allocation5 + $0x10] sm:$0xf]
    %v75 = vld [vmem:[#allocation5 + $0x14] sm:$0xf]
    %v76 = vld [vmem:[#allocation5 + $0x18] sm:$0xf]
    %v77 = vld [vmem:[#allocation5 + $0x1c] sm:$0xf]
    %v78 = vld [vmem:[#allocation5 + $0x20] sm:$0xf]
    %v79 = vld [vmem:[#allocation5 + $0x24] sm:$0xf]
    %v80 = vld [vmem:[#allocation5 + $0x28] sm:$0xf]
    %v81 = vld [vmem:[#allocation5 + $0x2c] sm:$0xf]
    %v82 = vld [vmem:[#allocation5 + $0x30] sm:$0xf]
    %v83 = vld [vmem:[#allocation5 + $0x34] sm:$0xf]
    %v84 = vld [vmem:[#allocation5 + $0x38] sm:$0xf]
    %v85 = vld [vmem:[#allocation5 + $0x3c] sm:$0xf]
    %v86 = vld [vmem:[%s2] sm:$0x1]
    %v88 = vperm.slane %v86, 0
    %v92 = vunpack.c.l.b16 %v68
    %v93 = vunpack.c.l.b16 %v69
    %v94 = vpack.c.b16 %v93, %v92
    %v112 = vunpack.c.l.b16 %v70
    %v113 = vunpack.c.l.b16 %v71
    %v114 = vunpack.c.l.b16 %v72
    %v115 = vunpack.c.l.b16 %v73
    %v116 = vunpack.c.l.b16 %v74
    %v117 = vunpack.c.l.b16 %v75
    %v118 = vunpack.c.l.b16 %v76
    %v119 = vunpack.c.l.b16 %v77
    %v120 = vunpack.c.l.b16 %v78
    %v121 = vunpack.c.l.b16 %v79
    %v122 = vunpack.c.l.b16 %v80
    %v123 = vunpack.c.l.b16 %v81
    %v124 = vunpack.c.l.b16 %v82
    %v125 = vunpack.c.l.b16 %v83
    %v126 = vunpack.c.l.b16 %v84
    %v127 = vunpack.c.l.b16 %v85
    %v128 = vpack.c.b16 %v113, %v112
    %v129 = vpack.c.b16 %v115, %v114
    %v130 = vpack.c.b16 %v117, %v116
    %v131 = vpack.c.b16 %v119, %v118
    %v132 = vpack.c.b16 %v121, %v120
    %v133 = vpack.c.b16 %v123, %v122
    %v134 = vpack.c.b16 %v125, %v124
    %v135 = vpack.c.b16 %v127, %v126
    %144 = vmatpush.bf16.msra.mxu0 %v135
    %145 = vmatpush.bf16.msra.mxu0 %v134
    %146 = vmatpush.bf16.msra.mxu0 %v133
    %147 = vmatpush.bf16.msra.mxu0 %v132
    %148 = vmatpush.bf16.msra.mxu0 %v131
    %149 = vmatpush.bf16.msra.mxu0 %v130
    %150 = vmatpush.bf16.msra.mxu0 %v129
    %151 = vmatpush.bf16.msra.mxu0 %v128
    %152 = vmatmul.bf16.gmra.mxu0 %v94
    %v153 = vpop.f32.mrf.mxu0
    %v154 = vadd.f32 %v88, %v153
    %v155 = vpop.f32.mrf.mxu0
    %v156 = vadd.f32 %v88, %v155
    %157 = vdwg.mxu0
    %v158 = vmax.f32 %v154, 0.0
    %v159 = vmax.f32 %v156, 0.0
    %v160 = vpack.c.bf16 %v159, %v158
    %v161 = vld [vmem:[#allocation7] sm:$0xf]
    %v162 = vld [vmem:[#allocation7 + $0x4] sm:$0xf]
    %v163 = vld [vmem:[#allocation7 + $0x8] sm:$0xf]
    %v164 = vld [vmem:[#allocation7 + $0xc] sm:$0xf]
    %v165 = vld [vmem:[#allocation7 + $0x10] sm:$0xf]
    %v166 = vld [vmem:[#allocation7 + $0x14] sm:$0xf]
    %v167 = vld [vmem:[#allocation7 + $0x18] sm:$0xf]
    %v168 = vld [vmem:[#allocation7 + $0x1c] sm:$0xf]
    %v169 = vld [vmem:[#allocation7 + $0x20] sm:$0xf]
    %v170 = vld [vmem:[#allocation7 + $0x24] sm:$0xf]
    %v171 = vld [vmem:[#allocation7 + $0x28] sm:$0xf]
    %v172 = vld [vmem:[#allocation7 + $0x2c] sm:$0xf]
    %v173 = vld [vmem:[#allocation7 + $0x30] sm:$0xf]
    %v174 = vld [vmem:[#allocation7 + $0x34] sm:$0xf]
    %v175 = vld [vmem:[#allocation7 + $0x38] sm:$0xf]
    %v176 = vld [vmem:[#allocation7 + $0x3c] sm:$0xf]
    %v177 = vld [vmem:[%s4] sm:$0x1]
    %v179 = vperm.slane %v177, 0
    %v197 = vunpack.c.l.b16 %v161
    %v198 = vunpack.c.l.b16 %v162
    %v199 = vunpack.c.l.b16 %v163
    %v200 = vunpack.c.l.b16 %v164
    %v201 = vunpack.c.l.b16 %v165
    %v202 = vunpack.c.l.b16 %v166
    %v203 = vunpack.c.l.b16 %v167
    %v204 = vunpack.c.l.b16 %v168
    %v205 = vunpack.c.l.b16 %v169
    %v206 = vunpack.c.l.b16 %v170
    %v207 = vunpack.c.l.b16 %v171
    %v208 = vunpack.c.l.b16 %v172
    %v209 = vunpack.c.l.b16 %v173
    %v210 = vunpack.c.l.b16 %v174
    %v211 = vunpack.c.l.b16 %v175
    %v212 = vunpack.c.l.b16 %v176
    %v213 = vpack.c.b16 %v198, %v197
    %v214 = vpack.c.b16 %v200, %v199
    %v215 = vpack.c.b16 %v202, %v201
    %v216 = vpack.c.b16 %v204, %v203
    %v217 = vpack.c.b16 %v206, %v205
    %v218 = vpack.c.b16 %v208, %v207
    %v219 = vpack.c.b16 %v210, %v209
    %v220 = vpack.c.b16 %v212, %v211
    %229 = vmatpush.bf16.msra.mxu0 %v220
    %230 = vmatpush.bf16.msra.mxu0 %v219
    %231 = vmatpush.bf16.msra.mxu0 %v218
    %232 = vmatpush.bf16.msra.mxu0 %v217
    %233 = vmatpush.bf16.msra.mxu0 %v216
    %234 = vmatpush.bf16.msra.mxu0 %v215
    %235 = vmatpush.bf16.msra.mxu0 %v214
    %236 = vmatpush.bf16.msra.mxu0 %v213
    %237 = vmatmul.bf16.gmra.mxu0 %v160
    %v238 = vpop.f32.mrf.mxu0
    %v239 = vadd.f32 %v179, %v238
    %v240 = vpop.f32.mrf.mxu0
    %v241 = vadd.f32 %v179, %v240
    %242 = vdwg.mxu0
    %v243 = vmax.f32 %v239, 0.0
    %v244 = vmax.f32 %v241, 0.0
    %245 = vst [vmem:[#allocation8] sm:$0xff] %v243
    %246 = vst [vmem:[#allocation8 + $0x8] sm:$0xff] %v244
    // Predicated region
    $region34: #{tpu_custom_call.1} parent=1 // pred_check
      _
    $region35: #{tpu_custom_call.1} parent=1 // pred_check_branch
      %248 = sbr.rel (0) target = $region37
    $region36: #{tpu_custom_call.1} parent=1 // pred_region
      %250 = vsyncadd [#allocation4], 0
      %s251 = sshll.u32 [#allocation8], 4
      %s252 = int_to_ptr.vmem [resolvable:$true] %s251
      %s253 = sshll.u32 %s5, 4
      %s254 = int_to_ptr.hbm [resolvable:$true] %s253
      %259 = dma.vmem_to_hbm [thread:$0]  %s252, 256, %s254, [#allocation4], 128, 128, 8
    $region37: #{tpu_custom_call.1} parent=1 // pred_fallthru
      _
    // Predicated region
    $region38: #{tpu_custom_call.1} parent=1 // pred_check
      _
    $region39: #{tpu_custom_call.1} parent=1 // pred_check_branch
      %261 = sbr.rel (0) target = $region41
    $region40: #{tpu_custom_call.1} parent=1 // pred_region
      %263 = dma.done [#allocation4], 256
    $region41: #{tpu_custom_call.1} parent=1 // pred_fallthru
      _
    %264 = vsyncpa [#allocation3], 1
    %265 = vsyncpa [#allocation6], 1
    %266 = vsyncpa [#allocation4], 1

</llo_original>
